<compile_context>
chip_gen: v6e
topology: v6e:2x2x1
jax: 0.10.0
libtpu: 0.0.40
codegen_flags: <defaults>
</compile_context>

<pallas_src>
import functools

import jax
import jax.numpy as jnp
import numpy as np
from jax.experimental import pallas as pl
from jax.experimental.pallas import tpu as pltpu


def _round_up(x, m):
    return ((x + m - 1) // m) * m


def _pick_batch_tile(bs_len):
    """Large tiles for MXU/DMA efficiency, but keep >=2 grid steps (v7x megacore)."""
    tile = min(512, _round_up(bs_len, 8))
    if bs_len >= 16 and pl.cdiv(bs_len, tile) < 2:
        tile = max(8, _round_up(pl.cdiv(bs_len, 2), 8))
    return tile


def _cnn_kernel(x_ref, w_ref, b_ref, o_ref, *, kernel_size, padding, w_len):
    """One batch tile: im2col -> single matmul -> max over width -> bias -> ReLU.

    x_ref: (TB, w_len, e_char)        VMEM, bf16 (un-padded; padding handled here)
    w_ref: (K*e_char, e_word)         VMEM, bf16 (full)
    b_ref: (1, e_word)                VMEM, f32  (full)
    o_ref: (TB, e_word)               VMEM, f32
    """
    tb, _, e_char = x_ref.shape
    e_word = o_ref.shape[1]
    l_out = w_len + 2 * padding - kernel_size + 1

    x = x_ref[...]                                   # (TB, w_len, e_char)
    zero_tap = jnp.zeros((tb, e_char), dtype=x.dtype)

    # im2col over (t, k): rows ordered t-major, contraction columns ordered (k, c).
    # Static t/k -> fully unrolled; out-of-range taps are compile-time zeros, so
    # no materialized x_pad is needed.
    cols = []
    for t in range(l_out):
        taps = []
        for k in range(kernel_size):
            j = t + k - padding
            taps.append(x[:, j, :] if 0 <= j < w_len else zero_tap)
        cols.append(jnp.concatenate(taps, axis=-1))  # (TB, K*e_char)
    lhs = jnp.concatenate(cols, axis=0)              # (l_out*TB, K*e_char)

    # Single MXU matmul per tile, f32 accumulation.
    acc = jnp.dot(lhs, w_ref[...], preferred_element_type=jnp.float32)
    acc = acc.reshape(l_out, tb, e_word)

    # Bias + ReLU hoisted out of the position loop (ReLU is monotone, bias const in t).
    raw_max = jnp.max(acc, axis=0)                   # (TB, e_word)
    o_ref[...] = jnp.maximum(raw_max + b_ref[...], 0.0).astype(o_ref.dtype)


def cnn_forward(x_ncw, weight_oiw, bias, *, padding=1, batch_tile=None,
                compute_dtype=jnp.bfloat16):
    """Pallas implementation of CNN.forward.

    x_ncw:      (bs_len, e_char, w_len)  float32  (PyTorch NCW layout)
    weight_oiw: (e_word, e_char, K)      float32  (PyTorch Conv1d weight layout)
    bias:       (e_word,)                float32
    returns:    (bs_len, e_word)         float32
    """
    bs_len, e_char, w_len = x_ncw.shape
    e_word, _, ksize = weight_oiw.shape
    l_out = w_len + 2 * padding - ksize + 1
    assert l_out >= 1, "w_len too small for this kernel_size/padding"

    if batch_tile is None:
        batch_tile = _pick_batch_tile(bs_len)
    batch_tile = max(8, _round_up(batch_tile, 8))

    bs_pad = _round_up(bs_len, batch_tile)

    # ---- glue (plain JAX) ----
    # NCW -> NWC relayout fused with the bf16 cast; NO materialized zero padding.
    x_nwc = jnp.transpose(x_ncw, (0, 2, 1)).astype(compute_dtype)  # (bs, w_len, e_char)
    if bs_pad != bs_len:
        x_nwc = jnp.pad(x_nwc, ((0, bs_pad - bs_len), (0, 0), (0, 0)))

    # weight (e_word, e_char, K) -> (K*e_char, e_word), row index = k*e_char + c.
    w_mat = jnp.transpose(weight_oiw, (2, 1, 0)).reshape(ksize * e_char, e_word)
    w_mat = w_mat.astype(compute_dtype)
    b_2d = bias.reshape(1, e_word).astype(jnp.float32)

    grid = (bs_pad // batch_tile,)
    kernel = functools.partial(_cnn_kernel, kernel_size=ksize, padding=padding,
                               w_len=w_len)

    # TODO(synk): e_word=32 < 128 lanes -> masked output stores; a lane-dense
    # repack only pays off if multiple filter banks are fused along e_word.
    out = pl.pallas_call(
        kernel,
        out_shape=jax.ShapeDtypeStruct((bs_pad, e_word), jnp.float32),
        grid_spec=pltpu.PrefetchScalarGridSpec(
            num_scalar_prefetch=0,
            grid=grid,
            in_specs=[
                pl.BlockSpec((batch_tile, w_len, e_char), lambda i: (i, 0, 0)),
                pl.BlockSpec((ksize * e_char, e_word), lambda i: (0, 0)),
                pl.BlockSpec((1, e_word), lambda i: (0, 0)),
            ],
            out_specs=pl.BlockSpec((batch_tile, e_word), lambda i: (i, 0)),
        ),
        compiler_params=pltpu.CompilerParams(
            dimension_semantics=("parallel",),
        ),
    )(x_nwc, w_mat, b_2d)

    return out[:bs_len]


if __name__ == "__main__":
    # Small shapes consistent with the module:
    #   bs_len = batch*sent_len = 16, e_char = 16, w_len = 8, e_word = 32, K = 5, pad = 1
    bs_len, e_char, w_len = 16, 16, 8
    e_word, ksize, pad = 32, 5, 1

    key = jax.random.PRNGKey(0)
    kx, kw, kb = jax.random.split(key, 3)

    x = jax.random.normal(kx, (bs_len, e_char, w_len), dtype=jnp.float32)

    # Deterministic parameter init mimicking PyTorch Conv1d default (uniform +-1/sqrt(fan_in)).
    fan_in = e_char * ksize
    bound = 1.0 / np.sqrt(fan_in)
    weight = jax.random.uniform(kw, (e_word, e_char, ksize), jnp.float32, -bound, bound)
    bias = jax.random.uniform(kb, (e_word,), jnp.float32, -bound, bound)

    # Default (bf16 inputs, f32 accumulation) and exact-f32 variants.
    out_bf16 = jax.block_until_ready(cnn_forward(x, weight, bias, padding=pad))
    out_f32 = jax.block_until_ready(
        cnn_forward(x, weight, bias, padding=pad, compute_dtype=jnp.float32))

    # Pure-JAX reference (same semantics as F.relu(conv1d(x)).max(-1).values).
    ref_conv = jax.lax.conv_general_dilated(
        x, weight, window_strides=(1,), padding=[(pad, pad)],
        dimension_numbers=("NCH", "OIH", "NCH"),
    )
    ref = jnp.max(jax.nn.relu(ref_conv + bias[None, :, None]), axis=-1)

    assert out_bf16.shape == (bs_len, e_word)
    np.testing.assert_allclose(np.asarray(out_f32), np.asarray(ref),
                               rtol=1e-5, atol=1e-5)
    # bf16 inputs introduce ~1e-3 relative drift vs the f32 reference.
    np.testing.assert_allclose(np.asarray(out_bf16), np.asarray(ref),
                               rtol=2e-2, atol=2e-2)

    print("KERNEL_OK")
</pallas_src>

<mosaic_0001>
module attributes {stable_mosaic.version = 11 : i64} {
  func.func @_cnn_kernel(%arg0: i32, %arg1: memref<8x8x16xbf16, #tpu.memory_space<vmem>>, %arg2: memref<80x32xbf16, #tpu.memory_space<vmem>>, %arg3: memref<1x32xf32, #tpu.memory_space<vmem>>, %arg4: memref<8x32xf32, #tpu.memory_space<vmem>>) attributes {dimension_semantics = [#tpu.dimension_semantics<parallel>], iteration_bounds = array<i64: 2>, scalar_prefetch = 0 : i64, scratch_operands = 0 : i64, tpu.core_type = #tpu.core_type<tc>, window_params = [{transform_indices = @transform_0, window_bounds = array<i64: 8, 8, 16>}, {pipeline_mode = #tpu.pipeline_mode<synchronous>, transform_indices = @transform_1, window_bounds = array<i64: 80, 32>}, {pipeline_mode = #tpu.pipeline_mode<synchronous>, transform_indices = @transform_2, window_bounds = array<i64: 1, 32>}, {transform_indices = @transform_3, window_bounds = array<i64: 8, 32>}]} {
    %c0 = arith.constant 0 : index
    %c0_0 = arith.constant 0 : index
    %c0_1 = arith.constant 0 : index
    %0 = vector.load %arg1[%c0, %c0_0, %c0_1] : memref<8x8x16xbf16, #tpu.memory_space<vmem>>, vector<8x8x16xbf16>
    %cst = arith.constant 0.000000e+00 : bf16
    %1 = vector.broadcast %cst : bf16 to vector<8x16xbf16>
    %2 = vector.extract_strided_slice %0 {offsets = [0, 0, 0], sizes = [8, 1, 16], strides = [1, 1, 1]} : vector<8x8x16xbf16> to vector<8x1x16xbf16>
    %3 = vector.shape_cast %2 : vector<8x1x16xbf16> to vector<8x16xbf16>
    %4 = vector.extract_strided_slice %0 {offsets = [0, 1, 0], sizes = [8, 1, 16], strides = [1, 1, 1]} : vector<8x8x16xbf16> to vector<8x1x16xbf16>
    %5 = vector.shape_cast %4 : vector<8x1x16xbf16> to vector<8x16xbf16>
    %6 = vector.extract_strided_slice %0 {offsets = [0, 2, 0], sizes = [8, 1, 16], strides = [1, 1, 1]} : vector<8x8x16xbf16> to vector<8x1x16xbf16>
    %7 = vector.shape_cast %6 : vector<8x1x16xbf16> to vector<8x16xbf16>
    %8 = vector.extract_strided_slice %0 {offsets = [0, 3, 0], sizes = [8, 1, 16], strides = [1, 1, 1]} : vector<8x8x16xbf16> to vector<8x1x16xbf16>
    %9 = vector.shape_cast %8 : vector<8x1x16xbf16> to vector<8x16xbf16>
    %10 = tpu.concatenate %1, %3, %5, %7, %9 in 1 : vector<8x16xbf16>, vector<8x16xbf16>, vector<8x16xbf16>, vector<8x16xbf16>, vector<8x16xbf16> -> vector<8x80xbf16>
    %11 = vector.extract_strided_slice %0 {offsets = [0, 0, 0], sizes = [8, 1, 16], strides = [1, 1, 1]} : vector<8x8x16xbf16> to vector<8x1x16xbf16>
    %12 = vector.shape_cast %11 : vector<8x1x16xbf16> to vector<8x16xbf16>
    %13 = vector.extract_strided_slice %0 {offsets = [0, 1, 0], sizes = [8, 1, 16], strides = [1, 1, 1]} : vector<8x8x16xbf16> to vector<8x1x16xbf16>
    %14 = vector.shape_cast %13 : vector<8x1x16xbf16> to vector<8x16xbf16>
    %15 = vector.extract_strided_slice %0 {offsets = [0, 2, 0], sizes = [8, 1, 16], strides = [1, 1, 1]} : vector<8x8x16xbf16> to vector<8x1x16xbf16>
    %16 = vector.shape_cast %15 : vector<8x1x16xbf16> to vector<8x16xbf16>
    %17 = vector.extract_strided_slice %0 {offsets = [0, 3, 0], sizes = [8, 1, 16], strides = [1, 1, 1]} : vector<8x8x16xbf16> to vector<8x1x16xbf16>
    %18 = vector.shape_cast %17 : vector<8x1x16xbf16> to vector<8x16xbf16>
    %19 = vector.extract_strided_slice %0 {offsets = [0, 4, 0], sizes = [8, 1, 16], strides = [1, 1, 1]} : vector<8x8x16xbf16> to vector<8x1x16xbf16>
    %20 = vector.shape_cast %19 : vector<8x1x16xbf16> to vector<8x16xbf16>
    %21 = tpu.concatenate %12, %14, %16, %18, %20 in 1 : vector<8x16xbf16>, vector<8x16xbf16>, vector<8x16xbf16>, vector<8x16xbf16>, vector<8x16xbf16> -> vector<8x80xbf16>
    %22 = vector.extract_strided_slice %0 {offsets = [0, 1, 0], sizes = [8, 1, 16], strides = [1, 1, 1]} : vector<8x8x16xbf16> to vector<8x1x16xbf16>
    %23 = vector.shape_cast %22 : vector<8x1x16xbf16> to vector<8x16xbf16>
    %24 = vector.extract_strided_slice %0 {offsets = [0, 2, 0], sizes = [8, 1, 16], strides = [1, 1, 1]} : vector<8x8x16xbf16> to vector<8x1x16xbf16>
    %25 = vector.shape_cast %24 : vector<8x1x16xbf16> to vector<8x16xbf16>
    %26 = vector.extract_strided_slice %0 {offsets = [0, 3, 0], sizes = [8, 1, 16], strides = [1, 1, 1]} : vector<8x8x16xbf16> to vector<8x1x16xbf16>
    %27 = vector.shape_cast %26 : vector<8x1x16xbf16> to vector<8x16xbf16>
    %28 = vector.extract_strided_slice %0 {offsets = [0, 4, 0], sizes = [8, 1, 16], strides = [1, 1, 1]} : vector<8x8x16xbf16> to vector<8x1x16xbf16>
    %29 = vector.shape_cast %28 : vector<8x1x16xbf16> to vector<8x16xbf16>
    %30 = vector.extract_strided_slice %0 {offsets = [0, 5, 0], sizes = [8, 1, 16], strides = [1, 1, 1]} : vector<8x8x16xbf16> to vector<8x1x16xbf16>
    %31 = vector.shape_cast %30 : vector<8x1x16xbf16> to vector<8x16xbf16>
    %32 = tpu.concatenate %23, %25, %27, %29, %31 in 1 : vector<8x16xbf16>, vector<8x16xbf16>, vector<8x16xbf16>, vector<8x16xbf16>, vector<8x16xbf16> -> vector<8x80xbf16>
    %33 = vector.extract_strided_slice %0 {offsets = [0, 2, 0], sizes = [8, 1, 16], strides = [1, 1, 1]} : vector<8x8x16xbf16> to vector<8x1x16xbf16>
    %34 = vector.shape_cast %33 : vector<8x1x16xbf16> to vector<8x16xbf16>
    %35 = vector.extract_strided_slice %0 {offsets = [0, 3, 0], sizes = [8, 1, 16], strides = [1, 1, 1]} : vector<8x8x16xbf16> to vector<8x1x16xbf16>
    %36 = vector.shape_cast %35 : vector<8x1x16xbf16> to vector<8x16xbf16>
    %37 = vector.extract_strided_slice %0 {offsets = [0, 4, 0], sizes = [8, 1, 16], strides = [1, 1, 1]} : vector<8x8x16xbf16> to vector<8x1x16xbf16>
    %38 = vector.shape_cast %37 : vector<8x1x16xbf16> to vector<8x16xbf16>
    %39 = vector.extract_strided_slice %0 {offsets = [0, 5, 0], sizes = [8, 1, 16], strides = [1, 1, 1]} : vector<8x8x16xbf16> to vector<8x1x16xbf16>
    %40 = vector.shape_cast %39 : vector<8x1x16xbf16> to vector<8x16xbf16>
    %41 = vector.extract_strided_slice %0 {offsets = [0, 6, 0], sizes = [8, 1, 16], strides = [1, 1, 1]} : vector<8x8x16xbf16> to vector<8x1x16xbf16>
    %42 = vector.shape_cast %41 : vector<8x1x16xbf16> to vector<8x16xbf16>
    %43 = tpu.concatenate %34, %36, %38, %40, %42 in 1 : vector<8x16xbf16>, vector<8x16xbf16>, vector<8x16xbf16>, vector<8x16xbf16>, vector<8x16xbf16> -> vector<8x80xbf16>
    %44 = vector.extract_strided_slice %0 {offsets = [0, 3, 0], sizes = [8, 1, 16], strides = [1, 1, 1]} : vector<8x8x16xbf16> to vector<8x1x16xbf16>
    %45 = vector.shape_cast %44 : vector<8x1x16xbf16> to vector<8x16xbf16>
    %46 = vector.extract_strided_slice %0 {offsets = [0, 4, 0], sizes = [8, 1, 16], strides = [1, 1, 1]} : vector<8x8x16xbf16> to vector<8x1x16xbf16>
    %47 = vector.shape_cast %46 : vector<8x1x16xbf16> to vector<8x16xbf16>
    %48 = vector.extract_strided_slice %0 {offsets = [0, 5, 0], sizes = [8, 1, 16], strides = [1, 1, 1]} : vector<8x8x16xbf16> to vector<8x1x16xbf16>
    %49 = vector.shape_cast %48 : vector<8x1x16xbf16> to vector<8x16xbf16>
    %50 = vector.extract_strided_slice %0 {offsets = [0, 6, 0], sizes = [8, 1, 16], strides = [1, 1, 1]} : vector<8x8x16xbf16> to vector<8x1x16xbf16>
    %51 = vector.shape_cast %50 : vector<8x1x16xbf16> to vector<8x16xbf16>
    %52 = vector.extract_strided_slice %0 {offsets = [0, 7, 0], sizes = [8, 1, 16], strides = [1, 1, 1]} : vector<8x8x16xbf16> to vector<8x1x16xbf16>
    %53 = vector.shape_cast %52 : vector<8x1x16xbf16> to vector<8x16xbf16>
    %54 = tpu.concatenate %45, %47, %49, %51, %53 in 1 : vector<8x16xbf16>, vector<8x16xbf16>, vector<8x16xbf16>, vector<8x16xbf16>, vector<8x16xbf16> -> vector<8x80xbf16>
    %55 = vector.extract_strided_slice %0 {offsets = [0, 4, 0], sizes = [8, 1, 16], strides = [1, 1, 1]} : vector<8x8x16xbf16> to vector<8x1x16xbf16>
    %56 = vector.shape_cast %55 : vector<8x1x16xbf16> to vector<8x16xbf16>
    %57 = vector.extract_strided_slice %0 {offsets = [0, 5, 0], sizes = [8, 1, 16], strides = [1, 1, 1]} : vector<8x8x16xbf16> to vector<8x1x16xbf16>
    %58 = vector.shape_cast %57 : vector<8x1x16xbf16> to vector<8x16xbf16>
    %59 = vector.extract_strided_slice %0 {offsets = [0, 6, 0], sizes = [8, 1, 16], strides = [1, 1, 1]} : vector<8x8x16xbf16> to vector<8x1x16xbf16>
    %60 = vector.shape_cast %59 : vector<8x1x16xbf16> to vector<8x16xbf16>
    %61 = vector.extract_strided_slice %0 {offsets = [0, 7, 0], sizes = [8, 1, 16], strides = [1, 1, 1]} : vector<8x8x16xbf16> to vector<8x1x16xbf16>
    %62 = vector.shape_cast %61 : vector<8x1x16xbf16> to vector<8x16xbf16>
    %63 = tpu.concatenate %56, %58, %60, %62, %1 in 1 : vector<8x16xbf16>, vector<8x16xbf16>, vector<8x16xbf16>, vector<8x16xbf16>, vector<8x16xbf16> -> vector<8x80xbf16>
    %64 = tpu.concatenate %10, %21, %32, %43, %54, %63 in 0 : vector<8x80xbf16>, vector<8x80xbf16>, vector<8x80xbf16>, vector<8x80xbf16>, vector<8x80xbf16>, vector<8x80xbf16> -> vector<48x80xbf16>
    %c0_2 = arith.constant 0 : index
    %c0_3 = arith.constant 0 : index
    %65 = vector.load %arg2[%c0_2, %c0_3] : memref<80x32xbf16, #tpu.memory_space<vmem>>, vector<80x32xbf16>
    %cst_4 = arith.constant dense<0.000000e+00> : vector<48x32xf32>
    %66 = tpu.matmul %64, %65, %cst_4 {dimension_numbers = #tpu.dot_dimension_numbers<[1], [0], [0], [1], [0, 0, 1, 1], [], []>} : vector<48x80xbf16>, vector<80x32xbf16>, vector<48x32xf32> -> vector<48x32xf32>
    %67 = vector.shape_cast %66 : vector<48x32xf32> to vector<6x8x32xf32>
    %cst_5 = arith.constant dense<0xFF800000> : vector<8x32xf32>
    %68 = vector.multi_reduction <maximumf>, %67, %cst_5 [0] : vector<6x8x32xf32> to vector<8x32xf32>
    %c0_6 = arith.constant 0 : index
    %c0_7 = arith.constant 0 : index
    %69 = vector.load %arg3[%c0_6, %c0_7] : memref<1x32xf32, #tpu.memory_space<vmem>>, vector<1x32xf32>
    %70 = vector.broadcast %69 : vector<1x32xf32> to vector<8x32xf32>
    %71 = arith.addf %68, %70 : vector<8x32xf32>
    %cst_8 = arith.constant 0.000000e+00 : f32
    %72 = vector.broadcast %cst_8 : f32 to vector<8x32xf32>
    %73 = arith.maximumf %71, %72 : vector<8x32xf32>
    %c0_9 = arith.constant 0 : index
    %c0_10 = arith.constant 0 : index
    %74 = vector.load %arg4[%c0_9, %c0_10] : memref<8x32xf32, #tpu.memory_space<vmem>>, vector<8x32xf32>
    tpu.vector_store %arg4[%c0_9, %c0_10], %73 {strides = array<i32>} : memref<8x32xf32, #tpu.memory_space<vmem>>, vector<8x32xf32>,
    return
  }
  func.func @transform_0(%arg0: i32) -> (i32, i32, i32) {
    %c0_i32 = arith.constant 0 : i32
    %c0_i32_0 = arith.constant 0 : i32
    %c0_i32_1 = arith.constant 0 : i32
    return %arg0, %c0_i32, %c0_i32_0 : i32, i32, i32
  }
  func.func @transform_1(%arg0: i32) -> (i32, i32) {
    %c0_i32 = arith.constant 0 : i32
    %c0_i32_0 = arith.constant 0 : i32
    %c0_i32_1 = arith.constant 0 : i32
    return %c0_i32, %c0_i32_0 : i32, i32
  }
  func.func @transform_2(%arg0: i32) -> (i32, i32) {
    %c0_i32 = arith.constant 0 : i32
    %c0_i32_0 = arith.constant 0 : i32
    %c0_i32_1 = arith.constant 0 : i32
    return %c0_i32, %c0_i32_0 : i32, i32
  }
  func.func @transform_3(%arg0: i32) -> (i32, i32) {
    %c0_i32 = arith.constant 0 : i32
    %c0_i32_0 = arith.constant 0 : i32
    return %arg0, %c0_i32 : i32, i32
  }
}

</mosaic_0001>

<llo_original>
// kernel: tpu_custom_call.1
$region0: #{tpu_custom_call.1}
  #allocation0 [shape = 'u32[]', space=smem, size = 0x4, offset = 0x4, fixed_abs, tag = 'smem constant byte address 0x4 - core index']
  #allocation1 [shape = 'u32[144,128]{1,0:T(1,128)}', space=vmem, size = 0x12000, scoped, tag = 'internal scratch']
  %s0 = inlined_call_operand.hbm [shape: bf16[16,8,16], index: 0, kind: input, shape index: {}]
  %s1 = inlined_call_operand.vmem [shape: bf16[80,32], index: 1, kind: input, shape index: {}]
  %s2 = inlined_call_operand.vmem [shape: f32[1,32], index: 2, kind: input, shape index: {}]
  %s3 = inlined_call_operand.hbm [shape: f32[16,32], index: 3, kind: output, shape index: {}]
  %s4 = sld [smem:[#allocation0]]
  $region49: #{tpu_custom_call.1} parent=0
    _
  %s6 = ssub.s32 1, %s4
  %s7 = scalar_select 0, %s6, %s4
  $region1: #{tpu_custom_call.1} parent=0
    #allocation2 [shape = 'u8[32768]{0}', space=vmem, size = 0x8000, scoped, tag = 'input window, operand 0']
    #allocation3 [shape = 's32[2]{0}', space=sflag, size = 0x8, scoped, tag = 'scoped memory for tpu_custom_call.1']
    #allocation4 [shape = 's32[2]{0}', space=sflag, size = 0x8, scoped, tag = 'scoped memory for tpu_custom_call.1']
    #allocation5 [shape = 'u8[8192]{0}', space=vmem, size = 0x2000, scoped, tag = 'output window, operand 0']
    %8 = vsyncpa [#allocation3], 0
    %s9 = scalar_lea.sflag [#allocation3], 1
    %10 = vsyncpa %s9, 0
    %11 = vsyncpa [#allocation4], 0
    %s12 = scalar_lea.sflag [#allocation4], 1
    %13 = vsyncpa %s12, 0
    loop: start=0, step=1, limit=4
    $region2: #{tpu_custom_call.1} parent=1 // loop_pre_header
      _
    $region3: #{tpu_custom_call.1} parent=1 // loop_header
      %s15 = sphi 0, %s19
      %p16 = scmp.ge.s32.totalorder %s15, 4
      %s25 = sphi 0, %s27
      %s28 = sphi 0, %s25
      %s29 = sphi 0, %s28
      %s45 = sphi 0, %s29
      %s49 = sphi 0, %s49
      %s51 = sphi 0, %s49
      %s52 = sphi 0, %s51
      %s66 = sphi 0, %s52
      %s70 = sphi 0, %s70
      %s72 = sphi 0, %s70
      %s73 = sphi 0, %s72
      %s87 = sphi 0, %s73
      %s93 = sphi 0, %s95
      %s96 = sphi 0, %s93
      %s97 = sphi 0, %s96
      %s113 = sphi 0, %s97
    $region4: #{tpu_custom_call.1} parent=1 // loop_header_branch
      %18 = sbr.rel (%p16) target = $region8
    $region5: #{tpu_custom_call.1} parent=1 // loop_body
      %s20 = ssub.s32 %s15, 1
      %s21 = ssub.s32 %s15, 2
      %s22 = sadd.s32 %s15, 1
      %s23 = ssub.s32 %s15, %s22
      %p24 = scmp.eq.s32.totalorder %s23, 0
      %s26 = sadd.s32 %s25, 1
      %s27 = scalar_select %p24, %s25, %s26
      %p30 = pneg %p24
      %p31 = scmp.eq.s32.totalorder %s15, 1
      %p32 = por %p30, %p31
      %p33 = scmp.ne.s32.totalorder %s25, %s28
      %p34 = scmp.eq.s32.totalorder %s15, 0
      %p35 = por %p33, %p34
      %p36 = scmp.ne.s32.totalorder %s25, %s28
      %p37 = scmp.eq.s32.totalorder %s20, 1
      %p38 = por %p36, %p37
      %p39 = scmp.ne.s32.totalorder %s28, %s29
      %p40 = scmp.eq.s32.totalorder %s20, 0
      %p41 = por %p39, %p40
      %p42 = scmp.ne.s32.totalorder %s28, %s29
      %p43 = scmp.eq.s32.totalorder %s21, 1
      %p44 = por %p42, %p43
      %p46 = scmp.ne.s32.totalorder %s29, %s45
      %p47 = scmp.eq.s32.totalorder %s21, 0
      %p48 = por %p46, %p47
      %s50 = sadd.s32 %s49, 1
      %p53 = scmp.eq.s32.totalorder %s15, 1
      %p54 = scmp.ne.s32.totalorder %s49, %s51
      %p55 = scmp.eq.s32.totalorder %s15, 0
      %p56 = por %p54, %p55
      %p57 = scmp.ne.s32.totalorder %s49, %s51
      %p58 = scmp.eq.s32.totalorder %s20, 1
      %p59 = por %p57, %p58
      %p60 = scmp.ne.s32.totalorder %s51, %s52
      %p61 = scmp.eq.s32.totalorder %s20, 0
      %p62 = por %p60, %p61
      %p63 = scmp.ne.s32.totalorder %s51, %s52
      %p64 = scmp.eq.s32.totalorder %s21, 1
      %p65 = por %p63, %p64
      %p67 = scmp.ne.s32.totalorder %s52, %s66
      %p68 = scmp.eq.s32.totalorder %s21, 0
      %p69 = por %p67, %p68
      %s71 = sadd.s32 %s70, 1
      %p74 = scmp.eq.s32.totalorder %s15, 1
      %p75 = scmp.ne.s32.totalorder %s70, %s72
      %p76 = scmp.eq.s32.totalorder %s15, 0
      %p77 = por %p75, %p76
      %p78 = scmp.ne.s32.totalorder %s70, %s72
      %p79 = scmp.eq.s32.totalorder %s20, 1
      %p80 = por %p78, %p79
      %p81 = scmp.ne.s32.totalorder %s72, %s73
      %p82 = scmp.eq.s32.totalorder %s20, 0
      %p83 = por %p81, %p82
      %p84 = scmp.ne.s32.totalorder %s72, %s73
      %p85 = scmp.eq.s32.totalorder %s21, 1
      %p86 = por %p84, %p85
      %p88 = scmp.ne.s32.totalorder %s73, %s87
      %p89 = scmp.eq.s32.totalorder %s21, 0
      %p90 = por %p88, %p89
      %s91 = ssub.s32 %s15, %s22
      %p92 = scmp.eq.s32.totalorder %s91, 0
      %s94 = sadd.s32 %s93, 1
      %s95 = scalar_select %p92, %s93, %s94
      %p98 = pneg %p92
      %p99 = scmp.eq.s32.totalorder %s15, 1
      %p100 = por %p98, %p99
      %p101 = scmp.ne.s32.totalorder %s93, %s96
      %p102 = scmp.eq.s32.totalorder %s15, 0
      %p103 = por %p101, %p102
      %p104 = scmp.ne.s32.totalorder %s93, %s96
      %p105 = scmp.eq.s32.totalorder %s20, 1
      %p106 = por %p104, %p105
      %p107 = scmp.ne.s32.totalorder %s96, %s97
      %p108 = scmp.eq.s32.totalorder %s20, 0
      %p109 = por %p107, %p108
      %p110 = scmp.ne.s32.totalorder %s96, %s97
      %p111 = scmp.eq.s32.totalorder %s21, 1
      %p112 = por %p110, %p111
      %p114 = scmp.ne.s32.totalorder %s97, %s113
      %p115 = scmp.eq.s32.totalorder %s21, 0
      %p116 = por %p114, %p115
      %p117 = scmp.le.s32.totalorder 1, %s15
      %p118 = scmp.lt.s32.totalorder %s15, 3
      %p119 = pnand %p117, %p118
      %p120 = pneg %p119
      // Predicated region
      $region9: #{tpu_custom_call.1} parent=5 // pred_check
        _
      $region10: #{tpu_custom_call.1} parent=5 // pred_check_branch
        %122 = sbr.rel (%p119) target = $region12
      $region11: #{tpu_custom_call.1} parent=5 // pred_region
        %s123 = ssub.s32 %s15, 1
        // Predicated region
        $region13: #{tpu_custom_call.1} parent=11 // pred_check
          %p124 = pneg %p62
        $region14: #{tpu_custom_call.1} parent=11 // pred_check_branch
          %126 = sbr.rel (%p124) target = $region16
        $region15: #{tpu_custom_call.1} parent=11 // pred_region
          _
        $region16: #{tpu_custom_call.1} parent=11 // pred_fallthru
          _
        // Predicated region
        $region17: #{tpu_custom_call.1} parent=11 // pred_check
          %p127 = pneg %p83
        $region18: #{tpu_custom_call.1} parent=11 // pred_check_branch
          %129 = sbr.rel (%p127) target = $region20
        $region19: #{tpu_custom_call.1} parent=11 // pred_region
          _
        $region20: #{tpu_custom_call.1} parent=11 // pred_fallthru
          _
      $region12: #{tpu_custom_call.1} parent=5 // pred_fallthru
        _
      %p130 = scmp.lt.s32.totalorder %s15, 2
      // Predicated region
      $region21: #{tpu_custom_call.1} parent=5 // pred_check
        %p131 = pneg %p130
      $region22: #{tpu_custom_call.1} parent=5 // pred_check_branch
        %133 = sbr.rel (%p131) target = $region24
      $region23: #{tpu_custom_call.1} parent=5 // pred_region
        // Predicated region
        $region25: #{tpu_custom_call.1} parent=23 // pred_check
          %p134 = pneg %p35
        $region26: #{tpu_custom_call.1} parent=23 // pred_check_branch
          %136 = sbr.rel (%p134) target = $region28
        $region27: #{tpu_custom_call.1} parent=23 // pred_region
          %s137 = sand.u32 %s25, 1
          %s138 = scalar_lea.sflag [#allocation3], %s137
          %s139 = sand.u32 %s25, 1
          %s140 = smul.addr %s139, 32
          %s141 = scalar_lea.vmem [#allocation2], %s140
          %s142 = smul.u32 8, %s15
          %s144 = ssub.s32 512, 512
          %145 = vsyncadd %s138, %s144
          %s146 = smul.addr %s142, 64
          %s147 = scalar_lea.hbm %s0, %s146
          %s148 = sshll.u32 %s141, 4
          %s149 = int_to_ptr.vmem [resolvable:$true] %s148
          %154 = dma.hbm_to_vmem [thread:$0]  %s147, 512, %s149, %s138, 64, 64, 4
        $region28: #{tpu_custom_call.1} parent=23 // pred_fallthru
          _
      $region24: #{tpu_custom_call.1} parent=5 // pred_fallthru
        _
      %p155 = scmp.le.s32.totalorder 1, %s15
      %p156 = scmp.lt.s32.totalorder %s15, 3
      %p157 = pnand %p155, %p156
      %p158 = pneg %p157
      // Predicated region
      $region29: #{tpu_custom_call.1} parent=5 // pred_check
        _
      $region30: #{tpu_custom_call.1} parent=5 // pred_check_branch
        %160 = sbr.rel (%p157) target = $region32
      $region31: #{tpu_custom_call.1} parent=5 // pred_region
        %s161 = ssub.s32 %s15, 1
        %s162 = sand.u32 %s28, 1
        %s163 = scalar_lea.sflag [#allocation3], %s162
        %s164 = sand.u32 %s28, 1
        %s165 = smul.addr %s164, 32
        %s166 = scalar_lea.vmem [#allocation2], %s165
        // Predicated region
        $region33: #{tpu_custom_call.1} parent=31 // pred_check
          %p167 = pneg %p41
        $region34: #{tpu_custom_call.1} parent=31 // pred_check_branch
          %169 = sbr.rel (%p167) target = $region36
        $region35: #{tpu_custom_call.1} parent=31 // pred_region
          %170 = dma.done %s163, 512
        $region36: #{tpu_custom_call.1} parent=31 // pred_fallthru
          _
        %s171 = sand.u32 %s28, 1
        %s172 = scalar_lea.sflag [#allocation3], %s171
        %s173 = sand.u32 %s28, 1
        %s174 = smul.addr %s173, 32
        %s175 = scalar_lea.vmem [#allocation2], %s174
        %p176 = pneg %p41
        %p177 = pneg %p38
        %p178 = pneg %p62
        %p179 = pneg %p59
        %p180 = pneg %p83
        %p181 = pneg %p80
        %p182 = pneg %p109
        %p183 = pneg %p106
        %s184 = sand.u32 %s96, 1
        %s185 = scalar_lea.sflag [#allocation4], %s184
        %s186 = sand.u32 %s96, 1
        %s187 = smul.addr %s186, 8
        %s188 = scalar_lea.vmem [#allocation5], %s187
        %s189 = smul.u32 8, %s20
        %v191 = vld [vmem:[%s166] sm:$0xf]
        %v192 = vld [vmem:[%s166 + $0x4] sm:$0xf]
        %v193 = vld [vmem:[%s166 + $0x8] sm:$0xf]
        %v194 = vld [vmem:[%s166 + $0xc] sm:$0xf]
        %v195 = vld [vmem:[%s166 + $0x10] sm:$0xf]
        %v196 = vld [vmem:[%s166 + $0x14] sm:$0xf]
        %v197 = vld [vmem:[%s166 + $0x18] sm:$0xf]
        %v198 = vld [vmem:[%s166 + $0x1c] sm:$0xf]
        %v207 = vunpack.c.l.b16 %v191
        %v208 = vunpack.c.l.b16 %v192
        %v209 = vunpack.c.l.b16 %v193
        %v210 = vunpack.c.l.b16 %v194
        %v211 = vunpack.c.l.b16 %v195
        %v212 = vunpack.c.l.b16 %v196
        %v213 = vunpack.c.l.b16 %v197
        %v214 = vunpack.c.l.b16 %v198
        %v215 = vpack.c.b16 %v207, %v207
        %v216 = vpack.c.b16 %v208, %v208
        %v217 = vpack.c.b16 %v209, %v209
        %v218 = vpack.c.b16 %v210, %v210
        %v219 = vpack.c.b16 %v211, %v211
        %v220 = vpack.c.b16 %v212, %v212
        %v221 = vpack.c.b16 %v213, %v213
        %v222 = vpack.c.b16 %v214, %v214
        %v223 = vunpack.c.l.b16 %v215
        %v224 = vunpack.c.l.b16 %v216
        %v225 = vunpack.c.l.b16 %v217
        %v226 = vunpack.c.l.b16 %v218
        %v227 = vunpack.c.l.b16 %v219
        %v228 = vunpack.c.l.b16 %v220
        %v229 = vunpack.c.l.b16 %v221
        %v230 = vunpack.c.l.b16 %v222
        %v231 = vrot.slane %v224, 7
        %vm232 = vcmask 1041409
        %v233 = vsel %vm232, %v231, %v223
        %v234 = vrot.slane %v225, 6
        %vm235 = vcmask 1042434
        %v236 = vsel %vm235, %v234, %v233
        %v237 = vrot.slane %v226, 5
        %vm238 = vcmask 1043459
        %v239 = vsel %vm238, %v237, %v236
        %v240 = vrot.slane %v227, 4
        %vm241 = vcmask 1044484
        %v242 = vsel %vm241, %v240, %v239
        %v243 = vrot.slane %v228, 3
        %vm244 = vcmask 1045509
        %v245 = vsel %vm244, %v243, %v242
        %v246 = vrot.slane %v229, 2
        %vm247 = vcmask 1046534
        %v248 = vsel %vm247, %v246, %v245
        %v249 = vrot.slane %v230, 1
        %vm250 = vcmask 1047559
        %v251 = vsel %vm250, %v249, %v248
        %v252 = vpack.c.b16 %v251, %v251
        %253 = vrot.lane.b32.xlu0 %v252, 16
        %v254 = vpop.permute.xlu0 %253
        %v255 = vrot.slane %v223, 1
        %v256 = vsel %vm232, %v224, %v255
        %v257 = vrot.slane %v225, 7
        %v258 = vsel %vm235, %v257, %v256
        %v259 = vrot.slane %v226, 6
        %v260 = vsel %vm238, %v259, %v258
        %v261 = vrot.slane %v227, 5
        %v262 = vsel %vm241, %v261, %v260
        %v263 = vrot.slane %v228, 4
        %v264 = vsel %vm244, %v263, %v262
        %v265 = vrot.slane %v229, 3
        %v266 = vsel %vm247, %v265, %v264
        %v267 = vrot.slane %v230, 2
        %v268 = vsel %vm250, %v267, %v266
        %v269 = vpack.c.b16 %v268, %v268
        %270 = vrot.lane.b32.xlu0 %v269, 32
        %v271 = vpop.permute.xlu0 %270
        %v272 = vrot.slane %v223, 2
        %v273 = vrot.slane %v224, 1
        %v274 = vsel %vm232, %v273, %v272
        %v275 = vsel %vm235, %v225, %v274
        %v276 = vrot.slane %v226, 7
        %v277 = vsel %vm238, %v276, %v275
        %v278 = vrot.slane %v227, 6
        %v279 = vsel %vm241, %v278, %v277
        %v280 = vrot.slane %v228, 5
        %v281 = vsel %vm244, %v280, %v279
        %v282 = vrot.slane %v229, 4
        %v283 = vsel %vm247, %v282, %v281
        %v284 = vrot.slane %v230, 3
        %v285 = vsel %vm250, %v284, %v283
        %v286 = vpack.c.b16 %v285, %v285
        %287 = vrot.lane.b32.xlu0 %v286, 48
        %v288 = vpop.permute.xlu0 %287
        %v289 = vrot.slane %v223, 3
        %v290 = vrot.slane %v224, 2
        %v291 = vsel %vm232, %v290, %v289
        %v292 = vrot.slane %v225, 1
        %v293 = vsel %vm235, %v292, %v291
        %v294 = vsel %vm238, %v226, %v293
        %v295 = vrot.slane %v227, 7
        %v296 = vsel %vm241, %v295, %v294
        %v297 = vrot.slane %v228, 6
        %v298 = vsel %vm244, %v297, %v296
        %v299 = vrot.slane %v229, 5
        %v300 = vsel %vm247, %v299, %v298
        %v301 = vrot.slane %v230, 4
        %v302 = vsel %vm250, %v301, %v300
        %v303 = vpack.c.b16 %v302, %v302
        %304 = vrot.lane.b32.xlu0 %v303, 64
        %v305 = vpop.permute.xlu0 %304
        %vm306 = vcmask 130048
        %v309 = vsel %vm306, 0, %v254
        %vm310 = vcmask 261120
        %v312 = vsel %vm310, %v309, %v271
        %vm313 = vcmask 392192
        %v315 = vsel %vm313, %v312, %v288
        %vm316 = vcmask 523264
        %v318 = vsel %vm316, %v315, %v305
        %319 = vrot.lane.b32.xlu0 %v269, 16
        %v320 = vpop.permute.xlu0 %319
        %321 = vrot.lane.b32.xlu0 %v286, 32
        %v322 = vpop.permute.xlu0 %321
        %323 = vrot.lane.b32.xlu0 %v303, 48
        %v324 = vpop.permute.xlu0 %323
        %v325 = vrot.slane %v223, 4
        %v326 = vrot.slane %v224, 3
        %v327 = vsel %vm232, %v326, %v325
        %v328 = vrot.slane %v225, 2
        %v329 = vsel %vm235, %v328, %v327
        %v330 = vrot.slane %v226, 1
        %v331 = vsel %vm238, %v330, %v329
        %v332 = vsel %vm241, %v227, %v331
        %v333 = vrot.slane %v228, 7
        %v334 = vsel %vm244, %v333, %v332
        %v335 = vrot.slane %v229, 6
        %v336 = vsel %vm247, %v335, %v334
        %v337 = vrot.slane %v230, 5
        %v338 = vsel %vm250, %v337, %v336
        %v339 = vpack.c.b16 %v338, %v338
        %340 = vrot.lane.b32.xlu0 %v339, 64
        %v341 = vpop.permute.xlu0 %340
        %v344 = vsel %vm306, %v252, %v320
        %v346 = vsel %vm310, %v344, %v322
        %v348 = vsel %vm313, %v346, %v324
        %v350 = vsel %vm316, %v348, %v341
        %v351 = vsel %vm235, %v231, %v223
        %v352 = vsel %vm238, %v234, %v351
        %v353 = vsel %vm241, %v237, %v352
        %v354 = vsel %vm244, %v240, %v353
        %v355 = vsel %vm247, %v243, %v354
        %v356 = vsel %vm250, %v246, %v355
        %v357 = vpack.c.b16 %v249, %v356
        %v358 = vsel %vm235, %v224, %v255
        %v359 = vsel %vm238, %v257, %v358
        %v360 = vsel %vm241, %v259, %v359
        %v361 = vsel %vm244, %v261, %v360
        %v362 = vsel %vm247, %v263, %v361
        %v363 = vsel %vm250, %v265, %v362
        %v364 = vpack.c.b16 %v267, %v363
        %365 = vrot.lane.b32.xlu0 %v364, 16
        %v366 = vpop.permute.xlu0 %365
        %v367 = vsel %vm235, %v273, %v272
        %v368 = vsel %vm238, %v225, %v367
        %v369 = vsel %vm241, %v276, %v368
        %v370 = vsel %vm244, %v278, %v369
        %v371 = vsel %vm247, %v280, %v370
        %v372 = vsel %vm250, %v282, %v371
        %v373 = vpack.c.b16 %v284, %v372
        %374 = vrot.lane.b32.xlu0 %v373, 32
        %v375 = vpop.permute.xlu0 %374
        %v376 = vsel %vm235, %v290, %v289
        %v377 = vsel %vm238, %v292, %v376
        %v378 = vsel %vm241, %v226, %v377
        %v379 = vsel %vm244, %v295, %v378
        %v380 = vsel %vm247, %v297, %v379
        %v381 = vsel %vm250, %v299, %v380
        %v382 = vpack.c.b16 %v301, %v381
        %383 = vrot.lane.b32.xlu0 %v382, 48
        %v384 = vpop.permute.xlu0 %383
        %v385 = vsel %vm235, %v326, %v325
        %v386 = vsel %vm238, %v328, %v385
        %v387 = vsel %vm241, %v330, %v386
        %v388 = vsel %vm244, %v227, %v387
        %v389 = vsel %vm247, %v333, %v388
        %v390 = vsel %vm250, %v335, %v389
        %v391 = vpack.c.b16 %v337, %v390
        %392 = vrot.lane.b32.xlu0 %v391, 64
        %v393 = vpop.permute.xlu0 %392
        %v396 = vsel %vm306, %v357, %v366
        %v398 = vsel %vm310, %v396, %v375
        %v400 = vsel %vm313, %v398, %v384
        %v402 = vsel %vm316, %v400, %v393
        %v403 = vsel %vm238, %v231, %v223
        %v404 = vsel %vm241, %v234, %v403
        %v405 = vsel %vm244, %v237, %v404
        %v406 = vsel %vm247, %v240, %v405
        %v407 = vsel %vm250, %v243, %v406
        %v408 = vsel %vm232, %v249, %v246
        %v409 = vpack.c.b16 %v408, %v407
        %v410 = vsel %vm238, %v224, %v255
        %v411 = vsel %vm241, %v257, %v410
        %v412 = vsel %vm244, %v259, %v411
        %v413 = vsel %vm247, %v261, %v412
        %v414 = vsel %vm250, %v263, %v413
        %v415 = vsel %vm232, %v267, %v265
        %v416 = vpack.c.b16 %v415, %v414
        %417 = vrot.lane.b32.xlu0 %v416, 16
        %v418 = vpop.permute.xlu0 %417
        %v419 = vsel %vm238, %v273, %v272
        %v420 = vsel %vm241, %v225, %v419
        %v421 = vsel %vm244, %v276, %v420
        %v422 = vsel %vm247, %v278, %v421
        %v423 = vsel %vm250, %v280, %v422
        %v424 = vsel %vm232, %v284, %v282
        %v425 = vpack.c.b16 %v424, %v423
        %426 = vrot.lane.b32.xlu0 %v425, 32
        %v427 = vpop.permute.xlu0 %426
        %v428 = vsel %vm238, %v290, %v289
        %v429 = vsel %vm241, %v292, %v428
        %v430 = vsel %vm244, %v226, %v429
        %v431 = vsel %vm247, %v295, %v430
        %v432 = vsel %vm250, %v297, %v431
        %v433 = vsel %vm232, %v301, %v299
        %v434 = vpack.c.b16 %v433, %v432
        %435 = vrot.lane.b32.xlu0 %v434, 48
        %v436 = vpop.permute.xlu0 %435
        %v437 = vsel %vm238, %v326, %v325
        %v438 = vsel %vm241, %v328, %v437
        %v439 = vsel %vm244, %v330, %v438
        %v440 = vsel %vm247, %v227, %v439
        %v441 = vsel %vm250, %v333, %v440
        %v442 = vsel %vm232, %v337, %v335
        %v443 = vpack.c.b16 %v442, %v441
        %444 = vrot.lane.b32.xlu0 %v443, 64
        %v445 = vpop.permute.xlu0 %444
        %v448 = vsel %vm306, %v409, %v418
        %v450 = vsel %vm310, %v448, %v427
        %v452 = vsel %vm313, %v450, %v436
        %v454 = vsel %vm316, %v452, %v445
        %v455 = vsel %vm241, %v231, %v223
        %v456 = vsel %vm244, %v234, %v455
        %v457 = vsel %vm247, %v237, %v456
        %v458 = vsel %vm250, %v240, %v457
        %v459 = vsel %vm232, %v246, %v243
        %v460 = vsel %vm235, %v249, %v459
        %v461 = vpack.c.b16 %v460, %v458
        %v462 = vsel %vm241, %v224, %v255
        %v463 = vsel %vm244, %v257, %v462
        %v464 = vsel %vm247, %v259, %v463
        %v465 = vsel %vm250, %v261, %v464
        %v466 = vsel %vm232, %v265, %v263
        %v467 = vsel %vm235, %v267, %v466
        %v468 = vpack.c.b16 %v467, %v465
        %469 = vrot.lane.b32.xlu0 %v468, 16
        %v470 = vpop.permute.xlu0 %469
        %v471 = vsel %vm241, %v273, %v272
        %v472 = vsel %vm244, %v225, %v471
        %v473 = vsel %vm247, %v276, %v472
        %v474 = vsel %vm250, %v278, %v473
        %v475 = vsel %vm232, %v282, %v280
        %v476 = vsel %vm235, %v284, %v475
        %v477 = vpack.c.b16 %v476, %v474
        %478 = vrot.lane.b32.xlu0 %v477, 32
        %v479 = vpop.permute.xlu0 %478
        %v480 = vsel %vm241, %v290, %v289
        %v481 = vsel %vm244, %v292, %v480
        %v482 = vsel %vm247, %v226, %v481
        %v483 = vsel %vm250, %v295, %v482
        %v484 = vsel %vm232, %v299, %v297
        %v485 = vsel %vm235, %v301, %v484
        %v486 = vpack.c.b16 %v485, %v483
        %487 = vrot.lane.b32.xlu0 %v486, 48
        %v488 = vpop.permute.xlu0 %487
        %v489 = vsel %vm241, %v326, %v325
        %v490 = vsel %vm244, %v328, %v489
        %v491 = vsel %vm247, %v330, %v490
        %v492 = vsel %vm250, %v227, %v491
        %v493 = vsel %vm232, %v335, %v333
        %v494 = vsel %vm235, %v337, %v493
        %v495 = vpack.c.b16 %v494, %v492
        %496 = vrot.lane.b32.xlu0 %v495, 64
        %v497 = vpop.permute.xlu0 %496
        %v500 = vsel %vm306, %v461, %v470
        %v502 = vsel %vm310, %v500, %v479
        %v504 = vsel %vm313, %v502, %v488
        %v506 = vsel %vm316, %v504, %v497
        %v507 = vsel %vm244, %v231, %v223
        %v508 = vsel %vm247, %v234, %v507
        %v509 = vsel %vm250, %v237, %v508
        %v510 = vsel %vm232, %v243, %v240
        %v511 = vsel %vm235, %v246, %v510
        %v512 = vsel %vm238, %v249, %v511
        %v513 = vpack.c.b16 %v512, %v509
        %v514 = vsel %vm244, %v224, %v255
        %v515 = vsel %vm247, %v257, %v514
        %v516 = vsel %vm250, %v259, %v515
        %v517 = vsel %vm232, %v263, %v261
        %v518 = vsel %vm235, %v265, %v517
        %v519 = vsel %vm238, %v267, %v518
        %v520 = vpack.c.b16 %v519, %v516
        %521 = vrot.lane.b32.xlu0 %v520, 16
        %v522 = vpop.permute.xlu0 %521
        %v523 = vsel %vm244, %v273, %v272
        %v524 = vsel %vm247, %v225, %v523
        %v525 = vsel %vm250, %v276, %v524
        %v526 = vsel %vm232, %v280, %v278
        %v527 = vsel %vm235, %v282, %v526
        %v528 = vsel %vm238, %v284, %v527
        %v529 = vpack.c.b16 %v528, %v525
        %530 = vrot.lane.b32.xlu0 %v529, 32
        %v531 = vpop.permute.xlu0 %530
        %v532 = vsel %vm244, %v290, %v289
        %v533 = vsel %vm247, %v292, %v532
        %v534 = vsel %vm250, %v226, %v533
        %v535 = vsel %vm232, %v297, %v295
        %v536 = vsel %vm235, %v299, %v535
        %v537 = vsel %vm238, %v301, %v536
        %v538 = vpack.c.b16 %v537, %v534
        %539 = vrot.lane.b32.xlu0 %v538, 48
        %v540 = vpop.permute.xlu0 %539
        %v543 = vsel %vm306, %v513, %v522
        %v545 = vsel %vm310, %v543, %v531
        %v547 = vsel %vm313, %v545, %v540
        %v548 = vsel %vm316, %v547, 0
        %v550 = vrot.slane %v350, 4
        %v551 = vshrl.u32 %v402, 16
        %v553 = vshll.u32 %v402, 16
        %v555 = vrot.slane %v553, 1
        %v556 = vor.u32 %v551, %v555
        %v558 = vrot.slane %v454, 5
        %v559 = vshrl.u32 %v506, 16
        %v561 = vrot.slane %v559, 1
        %v562 = vshll.u32 %v506, 16
        %v564 = vrot.slane %v562, 2
        %v565 = vor.u32 %v561, %v564
        %v567 = vrot.slane %v548, 6
        %vm568 = vcmask 1043456
        %v570 = vsel %vm568, %v318, %v550
        %v573 = vsel %vm568, %v556, %v558
        %v576 = vsel %vm568, %v565, %v567
        %v577 = vld [vmem:[%s1] sm:$0xf]
        %v578 = vld [vmem:[%s1 + $0x4] sm:$0xf]
        %v579 = vld [vmem:[%s1 + $0x8] sm:$0xf]
        %v580 = vld [vmem:[%s1 + $0xc] sm:$0xf]
        %v581 = vld [vmem:[%s1 + $0x10] sm:$0xf]
        %v582 = vld [vmem:[%s1 + $0x14] sm:$0xf]
        %v583 = vld [vmem:[%s1 + $0x18] sm:$0xf]
        %v584 = vld [vmem:[%s1 + $0x1c] sm:$0xf]
        %v585 = vld [vmem:[%s1 + $0x20] sm:$0xf]
        %v586 = vld [vmem:[%s1 + $0x24] sm:$0xf]
        %v597 = vunpack.c.l.b16 %v577
        %v598 = vunpack.c.l.b16 %v578
        %v599 = vunpack.c.l.b16 %v579
        %v600 = vunpack.c.l.b16 %v580
        %v601 = vunpack.c.l.b16 %v581
        %v602 = vunpack.c.l.b16 %v582
        %v603 = vunpack.c.l.b16 %v583
        %v604 = vunpack.c.l.b16 %v584
        %v605 = vunpack.c.l.b16 %v585
        %v606 = vunpack.c.l.b16 %v586
        %v607 = vpack.c.b16 %v598, %v597
        %v608 = vpack.c.b16 %v600, %v599
        %v609 = vpack.c.b16 %v602, %v601
        %v610 = vpack.c.b16 %v604, %v603
        %v611 = vpack.c.b16 %v606, %v605
        %vm617 = vcmask 654336
        %v618 = vsel %vm617, %v570, 0
        %v620 = vsel %vm617, %v573, 0
        %v622 = vsel %vm617, %v576, 0
        %624 = vmatprep.subr.bf16.mxu0 0
        %625 = vmatpush1.bf16.msra.mxu0 0
        %626 = vmatprep.subr.bf16.mxu0 0
        %627 = vmatpush1.bf16.msra.mxu0 0
        %628 = vmatprep.subr.bf16.mxu0 0
        %629 = vmatpush1.bf16.msra.mxu0 0
        %630 = vmatprep.subr.bf16.mxu0 0
        %631 = vmatpush1.bf16.msra.mxu0 %v611
        %632 = vmatprep.subr.bf16.mxu0 0
        %633 = vmatpush1.bf16.msra.mxu0 %v610
        %634 = vmatprep.subr.bf16.mxu0 0
        %635 = vmatpush1.bf16.msra.mxu0 %v609
        %636 = vmatprep.subr.bf16.mxu0 0
        %637 = vmatpush1.bf16.msra.mxu0 %v608
        %638 = vmatprep.subr.bf16.mxu0 0
        %639 = vmatpush1.bf16.msra.mxu0 %v607
        %640 = vmatprep.subr.bf16.mxu0 0
        %641 = vmatpush2.bf16.msra.mxu0 0
        %642 = vmatprep.subr.bf16.mxu0 0
        %643 = vmatpush2.bf16.msra.mxu0 0
        %644 = vmatprep.subr.bf16.mxu0 0
        %645 = vmatpush2.bf16.msra.mxu0 0
        %646 = vmatprep.subr.bf16.mxu0 0
        %647 = vmatpush2.bf16.msra.mxu0 0
        %648 = vmatprep.subr.bf16.mxu0 0
        %649 = vmatpush2.bf16.msra.mxu0 0
        %650 = vmatprep.subr.bf16.mxu0 0
        %651 = vmatpush2.bf16.msra.mxu0 0
        %652 = vmatprep.subr.bf16.mxu0 0
        %653 = vmatpush2.bf16.msra.mxu0 0
        %654 = vmatprep.subr.bf16.mxu0 0
        %655 = vmatpush2.bf16.msra.mxu0 0
        %656 = vmatprep.mubr.bf16.mxu0 0
        %657 = vmatmul.mubr.bf16.gmra.mxu0 %v618
        %v658 = vpop.f32.mrf.mxu0
        %v659 = vadd.f32 0.0, %v658
        %v660 = vpop.f32.mrf.mxu0
        %v661 = vpop.f32.mrf.mxu0
        %v662 = vadd.f32 0.0, %v661
        %v663 = vpop.f32.mrf.mxu0
        %664 = vmatprep.mubr.bf16.mxu0 0
        %665 = vmatmul.mubr.bf16.gmra.mxu0 %v620
        %v666 = vpop.f32.mrf.mxu0
        %v667 = vadd.f32 0.0, %v666
        %v668 = vpop.f32.mrf.mxu0
        %v669 = vpop.f32.mrf.mxu0
        %v670 = vadd.f32 0.0, %v669
        %v671 = vpop.f32.mrf.mxu0
        %672 = vmatprep.mubr.bf16.mxu0 0
        %673 = vmatmul.mubr.bf16.gmra.mxu0 %v622
        %v674 = vpop.f32.mrf.mxu0
        %v675 = vadd.f32 0.0, %v674
        %v676 = vpop.f32.mrf.mxu0
        %v677 = vpop.f32.mrf.mxu0
        %v678 = vadd.f32 0.0, %v677
        %v679 = vpop.f32.mrf.mxu0
        %680 = vdwg.mxu0
        %v681 = vsel %vm310, %v659, -inf
        %v682 = vsel %vm310, %v662, -inf
        %v683 = vsel %vm310, %v667, -inf
        %v684 = vsel %vm310, %v670, -inf
        %v685 = vsel %vm310, %v675, -inf
        %v686 = vmax.f32 %v681, %v685
        %v687 = vsel %vm310, %v678, -inf
        %v688 = vmax.f32 %v682, %v687
        %v689 = vmax.f32 %v686, %v688
        %v690 = vmax.f32 %v683, %v684
        %v691 = vmax.f32 %v689, %v690
        %v692 = vld [vmem:[%s2] sm:$0x1]
        %v694 = vlaneseq
        %v695 = vshrl.u32 %v694, 7
        %v696 = vsub.s32 0, %v695
        %v697 = vrot.slane %v692, %v696
        %v699 = vadd.f32 %v691, %v697
        %v700 = vmax.f32 %v699, 0.0
        %701 = vst.msk [vmem:[%s188] sm:$0xff] %vm310, %v700
        %s702 = sand.u32 %s96, 1
        %s703 = scalar_lea.sflag [#allocation4], %s702
        %s704 = sand.u32 %s96, 1
        %s705 = smul.addr %s704, 8
        %s706 = scalar_lea.vmem [#allocation5], %s705
        // Predicated region
        $region37: #{tpu_custom_call.1} parent=31 // pred_check
          %p707 = pneg %p106
        $region38: #{tpu_custom_call.1} parent=31 // pred_check_branch
          %709 = sbr.rel (%p707) target = $region40
        $region39: #{tpu_custom_call.1} parent=31 // pred_region
          %s711 = ssub.s32 128, 128
          %712 = vsyncadd %s703, %s711
          %s713 = smul.addr %s20, 128
          %s714 = scalar_lea.hbm %s3, %s713
          %s716 = sshll.u32 %s706, 4
          %s717 = int_to_ptr.vmem [resolvable:$true] %s716
          %719 = dma.vmem_to_hbm [thread:$0]  %s717, 128, %s714, %s703
        $region40: #{tpu_custom_call.1} parent=31 // pred_fallthru
          _
      $region32: #{tpu_custom_call.1} parent=5 // pred_fallthru
        _
      %p720 = scmp.le.s32.totalorder 2, %s15
      // Predicated region
      $region41: #{tpu_custom_call.1} parent=5 // pred_check
        %p721 = pneg %p720
      $region42: #{tpu_custom_call.1} parent=5 // pred_check_branch
        %723 = sbr.rel (%p721) target = $region44
      $region43: #{tpu_custom_call.1} parent=5 // pred_region
        %s724 = ssub.s32 %s15, 2
        // Predicated region
        $region45: #{tpu_custom_call.1} parent=43 // pred_check
          %p725 = pneg %p112
        $region46: #{tpu_custom_call.1} parent=43 // pred_check_branch
          %727 = sbr.rel (%p725) target = $region48
        $region47: #{tpu_custom_call.1} parent=43 // pred_region
          %s728 = sand.u32 %s97, 1
          %s729 = scalar_lea.sflag [#allocation4], %s728
          %s730 = sand.u32 %s97, 1
          %s731 = smul.addr %s730, 8
          %s732 = scalar_lea.vmem [#allocation5], %s731
          %733 = dma.done %s729, 128
        $region48: #{tpu_custom_call.1} parent=43 // pred_fallthru
          _
      $region44: #{tpu_custom_call.1} parent=5 // pred_fallthru
        _
    $region6: #{tpu_custom_call.1} parent=1 // loop_footer
      %s19 = sadd.s32 1, %s15
    $region7: #{tpu_custom_call.1} parent=1 // loop_footer_branch
      %14 = sbr.rel target = $region3
    $region8: #{tpu_custom_call.1} parent=1 // loop_exit
      _
    %734 = vsyncpa [#allocation3], 1
    %s735 = scalar_lea.sflag [#allocation3], 1
    %736 = vsyncpa %s735, 1
    %737 = vsyncpa [#allocation4], 1
    %s738 = scalar_lea.sflag [#allocation4], 1
    %739 = vsyncpa %s738, 1

</llo_original>
